<compile_context>
chip_gen: v6e
topology: v6e:2x2x1
jax: 0.10.0
libtpu: 0.0.40
codegen_flags: <defaults>
</compile_context>

<pallas_src>
import jax
import jax.numpy as jnp
import numpy as np
from jax.experimental import pallas as pl
from jax.experimental.pallas import tpu as pltpu


def _round_up(x, m):
    return (x + m - 1) // m * m


def sage_conv_kernel(row_sref, col_ref, x_hbm, xroot_ref, wrel_ref, wroot_ref,
                     b_ref, o_ref, xsrc_ref, acc_ref, cnt_ref, sem):
    # Static sizes recovered from the ref shapes.
    _, te, cin_p = xsrc_ref.shape
    tr = o_ref.shape[0]

    r = pl.program_id(0)
    e = pl.program_id(1)
    n_e = pl.num_programs(1)
    slot = e % 2

    # ---- manual double-buffered row gather ---------------------------------
    def start_gather(tile_idx, s):
        base = tile_idx * te

        # NOTE: padded edges (row index 0) still fetch x[0]; only the final
        # partial edge tile is affected and guarding them would break the
        # byte-count-matched aggregated wait below.
        @pl.loop(0, te)
        def _(i):
            idx = row_sref[base + i]
            pltpu.make_async_copy(
                x_hbm.at[pl.ds(idx, 1)],
                xsrc_ref.at[s, pl.ds(i, 1), :],
                sem.at[s]).start()

    def wait_gather(s):
        # Single aggregated wait: one descriptor spanning the full [te, cin_p]
        # staging slot — exactly the total bytes of the te row copies above.
        pltpu.make_async_copy(
            x_hbm.at[pl.ds(0, te)],
            xsrc_ref.at[s],
            sem.at[s]).wait()

    # Per row-tile init + prime slot 0 with edge tile 0.
    @pl.when(e == 0)
    def _prime():
        acc_ref[...] = jnp.zeros_like(acc_ref)
        cnt_ref[...] = jnp.zeros_like(cnt_ref)
        start_gather(0, 0)

    # Prefetch edge tile e+1 into the other slot BEFORE waiting on this slot,
    # so the gather overlaps this step's MXU work (and primes slot 1 at e==0).
    @pl.when(e + 1 < n_e)
    def _prefetch():
        start_gather(e + 1, (e + 1) % 2)

    wait_gather(slot)

    # ---- segment-sum on the MXU, counts via XLU reduce ---------------------
    col_tile = col_ref[...]                                          # [1, te]
    dst_ids = jax.lax.broadcasted_iota(jnp.int32, (tr, te), 0) + r * tr
    mask = col_tile == dst_ids                                       # [tr, te]
    scatter_oh = mask.astype(xsrc_ref.dtype)
    acc_ref[...] += jnp.dot(scatter_oh, xsrc_ref[slot],
                            preferred_element_type=jnp.float32)      # [tr, cin_p]
    cnt_ref[...] += jnp.sum(mask, axis=-1, keepdims=True).astype(jnp.float32)

    # ---- epilogue: mean, two small matmuls + bias, L2 normalize ------------
    @pl.when(e == n_e - 1)
    def _finish():
        inv = pl.reciprocal(jnp.maximum(cnt_ref[...], 1.0))          # EUP
        agg = acc_ref[...] * inv                                     # mean
        root = xroot_ref[...].astype(jnp.float32)
        out = (jnp.dot(agg, wrel_ref[...], preferred_element_type=jnp.float32)
               + jnp.dot(root, wroot_ref[...], preferred_element_type=jnp.float32)
               + b_ref[...])
        ssq = jnp.sum(out * out, axis=-1, keepdims=True)
        # out / max(||out||, 1e-12)  ==  out * rsqrt(max(ssq, 1e-24))
        o_ref[...] = (out * jax.lax.rsqrt(jnp.maximum(ssq, 1e-24))
                      ).astype(o_ref.dtype)


def sage_conv(x, res_size, edge_index, w_root, w_rel, b_rel,
              *, edge_tile=256, row_tile=None):
    """x: [N, Cin], edge_index: [2, E] int, returns [res_size, Cout] f32."""
    N, cin = x.shape
    cout = w_rel.shape[0]
    E = edge_index.shape[1]
    assert res_size <= N, "res_size must not exceed the number of nodes"

    # Feature dtype drives MXU precision (bf16 x -> bf16 MXU); demo uses f32.
    feat_dtype = x.dtype if x.dtype in (jnp.bfloat16, jnp.float32) else jnp.float32
    f32 = jnp.float32

    cin_p = _round_up(cin, 128)
    cout_p = _round_up(cout, 128)

    te = max(128, _round_up(min(edge_tile, max(E, 1)), 128))
    e_p = _round_up(max(E, 1), te)

    if row_tile is None:
        tr = min(_round_up(res_size, 8), 256)
    else:
        tr = _round_up(row_tile, 8)
    r_p = _round_up(res_size, tr)

    # x stays in HBM (gather source) AND doubles as the root-feature input.
    # Padding rows to >= max(r_p, te) keeps the root blocks, the padded-edge
    # fetches of row 0 and the aggregated wait descriptor all in bounds.
    n_rows = max(N, r_p, te)
    x_p = jnp.zeros((n_rows, cin_p), feat_dtype).at[:N, :cin].set(
        x.astype(feat_dtype))

    # row -> SMEM scalar prefetch (pad with 0), col -> lane-major (pad with -1).
    row_p = jnp.zeros((e_p,), jnp.int32).at[:E].set(edge_index[0].astype(jnp.int32))
    col_p = jnp.full((1, e_p), -1, jnp.int32).at[0, :E].set(
        edge_index[1].astype(jnp.int32))

    # Pre-transposed, lane-padded weights (no fused zero rows anymore).
    w_rel_p = jnp.zeros((cin_p, cout_p), f32).at[:cin, :cout].set(w_rel.astype(f32).T)
    w_root_p = jnp.zeros((cin_p, cout_p), f32).at[:cin, :cout].set(w_root.astype(f32).T)
    b_p = jnp.zeros((1, cout_p), f32).at[0, :cout].set(b_rel.astype(f32))

    grid = (r_p // tr, e_p // te)

    # VMEM budget: tile footprint * 2x headroom, capped below v7x's 64 MiB.
    fb = jnp.dtype(feat_dtype).itemsize
    vmem_need = (2 * te * cin_p * fb                       # 2-deep gather staging
                 + tr * cin_p * 4 + tr * 128 * 4           # acc + counts scratch
                 + 2 * (2 * cin_p * cout_p * 4 + cout_p * 4)   # weights + bias
                 + 2 * tr * cin_p * fb                     # root block
                 + 2 * tr * cout_p * 4                     # output block
                 + 2 * 8 * te * 4)                         # col tile
    vmem_limit = int(min(max(2 * vmem_need, 16 * 1024 * 1024), 48 * 1024 * 1024))

    # TODO(synk): give the constant-index weight/bias BlockSpecs
    # pipeline_mode=pl.Buffered(1) to drop their double-buffered VMEM copies.
    grid_spec = pltpu.PrefetchScalarGridSpec(
        num_scalar_prefetch=1,
        grid=grid,
        in_specs=[
            pl.BlockSpec((1, te), lambda r, e, row: (0, e)),            # col tile
            pl.BlockSpec(memory_space=pl.ANY),                          # x (HBM, gather src)
            pl.BlockSpec((tr, cin_p), lambda r, e, row: (r, 0)),        # root features
            pl.BlockSpec((cin_p, cout_p), lambda r, e, row: (0, 0)),    # W_rel^T
            pl.BlockSpec((cin_p, cout_p), lambda r, e, row: (0, 0)),    # W_root^T
            pl.BlockSpec((1, cout_p), lambda r, e, row: (0, 0)),        # bias
        ],
        out_specs=pl.BlockSpec((tr, cout_p), lambda r, e, row: (r, 0)),
        scratch_shapes=[
            pltpu.VMEM((2, te, cin_p), feat_dtype),   # double-buffered gathered rows
            pltpu.VMEM((tr, cin_p), jnp.float32),     # segment-sum accumulator
            pltpu.VMEM((tr, 1), jnp.float32),         # bucket counts
            pltpu.SemaphoreType.DMA((2,)),            # one gather semaphore per slot
        ],
    )

    out_p = pl.pallas_call(
        sage_conv_kernel,
        out_shape=jax.ShapeDtypeStruct((r_p, cout_p), jnp.float32),
        grid_spec=grid_spec,
        compiler_params=pltpu.CompilerParams(
            dimension_semantics=("parallel", "arbitrary"),
            vmem_limit_bytes=vmem_limit,
        ),
    )(row_p, col_p, x_p, x_p, w_rel_p, w_root_p, b_p)

    return out_p[:res_size, :cout]


def _reference(x, res_size, edge_index, w_root, w_rel, b_rel):
    """Plain-JAX reference for sanity checking."""
    row, col = edge_index[0], edge_index[1]
    x_src = x[row]
    agg_sum = jax.ops.segment_sum(x_src, col, num_segments=res_size)
    counts = jax.ops.segment_sum(jnp.ones((edge_index.shape[1],)), col,
                                 num_segments=res_size)
    agg = agg_sum / jnp.maximum(counts, 1.0)[:, None]
    out = agg @ w_rel.T + b_rel + x[:res_size] @ w_root.T
    norm = jnp.sqrt(jnp.sum(out * out, axis=-1, keepdims=True))
    return out / jnp.maximum(norm, 1e-12)


if __name__ == "__main__":
    key = jax.random.PRNGKey(0)
    in_channels, out_channels = 16, 32
    N, res_size, E = 12, 8, 24

    k_x, k_row, k_col, k_wr, k_wl, k_b = jax.random.split(key, 6)

    x = jax.random.normal(k_x, (N, in_channels), dtype=jnp.float32)
    edge_index = jnp.stack([
        jax.random.randint(k_row, (E,), 0, N, dtype=jnp.int32),          # source
        jax.random.randint(k_col, (E,), 0, res_size, dtype=jnp.int32),   # dest
    ], axis=0)

    # Deterministic init mimicking nn.Linear.reset_parameters:
    # U(-1/sqrt(fan_in), 1/sqrt(fan_in)); weights stored [out, in] like PyTorch.
    bound = 1.0 / np.sqrt(in_channels)
    w_root = jax.random.uniform(k_wr, (out_channels, in_channels),
                                minval=-bound, maxval=bound, dtype=jnp.float32)
    w_rel = jax.random.uniform(k_wl, (out_channels, in_channels),
                               minval=-bound, maxval=bound, dtype=jnp.float32)
    b_rel = jax.random.uniform(k_b, (out_channels,),
                               minval=-bound, maxval=bound, dtype=jnp.float32)

    out = sage_conv(x, res_size, edge_index, w_root, w_rel, b_rel)
    out = jax.block_until_ready(out)

    ref = _reference(x, res_size, edge_index, w_root, w_rel, b_rel)
    np.testing.assert_allclose(np.asarray(out), np.asarray(ref),
                               rtol=1e-4, atol=1e-5)
    print("KERNEL_OK")
</pallas_src>

<mosaic_0001>
module attributes {stable_mosaic.version = 11 : i64} {
  func.func @sage_conv_kernel(%arg0: i32, %arg1: i32, %arg2: memref<128xi32, #tpu.memory_space<smem>>, %arg3: memref<1x128xi32, #tpu.memory_space<vmem>>, %arg4: memref<128x128xf32, #tpu.memory_space<any>>, %arg5: memref<8x128xf32, #tpu.memory_space<vmem>>, %arg6: memref<128x128xf32, #tpu.memory_space<vmem>>, %arg7: memref<128x128xf32, #tpu.memory_space<vmem>>, %arg8: memref<1x128xf32, #tpu.memory_space<vmem>>, %arg9: memref<8x128xf32, #tpu.memory_space<vmem>>, %arg10: memref<2x128x128xf32, #tpu.memory_space<vmem>>, %arg11: memref<8x128xf32, #tpu.memory_space<vmem>>, %arg12: memref<8x1xf32, #tpu.memory_space<vmem>>, %arg13: memref<2x!tpu.dma_semaphore, #tpu.memory_space<semaphore_mem>>) attributes {dimension_semantics = [#tpu.dimension_semantics<parallel>, #tpu.dimension_semantics<arbitrary>], iteration_bounds = array<i64: 1, 1>, scalar_prefetch = 1 : i64, scratch_operands = 4 : i64, tpu.core_type = #tpu.core_type<tc>, window_params = [{transform_indices = @transform_0, window_bounds = array<i64: 1, 128>}, {}, {transform_indices = @transform_2, window_bounds = array<i64: 8, 128>}, {pipeline_mode = #tpu.pipeline_mode<synchronous>, transform_indices = @transform_3, window_bounds = array<i64: 128, 128>}, {pipeline_mode = #tpu.pipeline_mode<synchronous>, transform_indices = @transform_4, window_bounds = array<i64: 128, 128>}, {pipeline_mode = #tpu.pipeline_mode<synchronous>, transform_indices = @transform_5, window_bounds = array<i64: 1, 128>}, {transform_indices = @transform_6, window_bounds = array<i64: 8, 128>}]} {
    %c2_i32 = arith.constant 2 : i32
    %c0_i32 = arith.constant 0 : i32
    %0 = arith.cmpi eq, %c2_i32, %c0_i32 : i32
    %c1_i32 = arith.constant 1 : i32
    %1 = arith.select %0, %c1_i32, %c2_i32 : i32
    %2 = arith.remsi %arg1, %1 : i32
    %c0_i32_0 = arith.constant 0 : i32
    %3 = arith.cmpi ne, %2, %c0_i32_0 : i32
    %c0_i32_1 = arith.constant 0 : i32
    %4 = arith.cmpi slt, %2, %c0_i32_1 : i32
    %c0_i32_2 = arith.constant 0 : i32
    %5 = arith.cmpi slt, %1, %c0_i32_2 : i32
    %6 = arith.xori %4, %5 : i1
    %7 = arith.andi %6, %3 : i1
    %8 = arith.addi %2, %1 : i32
    %9 = arith.select %7, %8, %2 : i32
    %c0_i32_3 = arith.constant 0 : i32
    %10 = arith.cmpi eq, %arg1, %c0_i32_3 : i32
    %11 = arith.extui %10 : i1 to i32
    %c0_i32_4 = arith.constant 0 : i32
    %12 = arith.cmpi ne, %11, %c0_i32_4 : i32
    scf.if %12 {
      %cst_26 = arith.constant 0.000000e+00 : f32
      %48 = vector.broadcast %cst_26 : f32 to vector<8x128xf32>
      %c0_27 = arith.constant 0 : index
      %c0_28 = arith.constant 0 : index
      %49 = vector.load %arg11[%c0_27, %c0_28] : memref<8x128xf32, #tpu.memory_space<vmem>>, vector<8x128xf32>
      tpu.vector_store %arg11[%c0_27, %c0_28], %48 {strides = array<i32>} : memref<8x128xf32, #tpu.memory_space<vmem>>, vector<8x128xf32>,
      %cst_29 = arith.constant 0.000000e+00 : f32
      %50 = vector.broadcast %cst_29 : f32 to vector<8x1xf32>
      %c0_30 = arith.constant 0 : index
      %c0_31 = arith.constant 0 : index
      %51 = vector.load %arg12[%c0_30, %c0_31] : memref<8x1xf32, #tpu.memory_space<vmem>>, vector<8x1xf32>
      tpu.vector_store %arg12[%c0_30, %c0_31], %50 {strides = array<i32>} : memref<8x1xf32, #tpu.memory_space<vmem>>, vector<8x1xf32>,
      %c0_i32_32 = arith.constant 0 : i32
      %c128_i32 = arith.constant 128 : i32
      %52 = arith.addi %c0_i32_32, %c128_i32 : i32
      %c1_i32_33 = arith.constant 1 : i32
      scf.for %arg14 = %c0_i32_32 to %52 step %c1_i32_33  : i32 {
        %c1_i32_35 = arith.constant 1 : i32
        %53 = arith.muli %arg14, %c1_i32_35 : i32
        %c0_i32_36 = arith.constant 0 : i32
        %54 = arith.addi %c0_i32_36, %53 : i32
        %c0_i32_37 = arith.constant 0 : i32
        %55 = arith.addi %c0_i32_37, %54 : i32
        %56 = arith.index_cast %55 : i32 to index
        %57 = memref.load %arg2[%56] : memref<128xi32, #tpu.memory_space<smem>>
        %c0_i32_38 = arith.constant 0 : i32
        %c0_i32_39 = arith.constant 0 : i32
        %c0_i32_40 = arith.constant 0 : i32
        %58 = tpu.memref_slice %arg4[%57, %c0_i32_40] : memref<128x128xf32, #tpu.memory_space<any>> -> memref<1x128xf32, #tpu.memory_space<any>>
        %c0_i32_41 = arith.constant 0 : i32
        %59 = tpu.memref_slice %arg10[%c0_i32_38, %54, %c0_i32_41] : memref<2x128x128xf32, #tpu.memory_space<vmem>> -> memref<1x1x128xf32, #tpu.memory_space<vmem>>
        %60 = tpu.memref_squeeze %59 : memref<1x1x128xf32, #tpu.memory_space<vmem>> -> memref<1x128xf32, #tpu.memory_space<vmem>>
        %61 = tpu.memref_slice %arg13[%c0_i32_39] : memref<2x!tpu.dma_semaphore, #tpu.memory_space<semaphore_mem>> -> memref<1x!tpu.dma_semaphore, #tpu.memory_space<semaphore_mem>>
        %62 = tpu.memref_squeeze %61 : memref<1x!tpu.dma_semaphore, #tpu.memory_space<semaphore_mem>> -> memref<!tpu.dma_semaphore, #tpu.memory_space<semaphore_mem>>
        tpu.enqueue_dma source(%58 : memref<1x128xf32, #tpu.memory_space<any>>) target(%60 : memref<1x128xf32, #tpu.memory_space<vmem>>) target_semaphore(%62 : memref<!tpu.dma_semaphore, #tpu.memory_space<semaphore_mem>>)
      }
      %c128_i32_34 = arith.constant 128 : i32
    } else {
    }
    %c1_i32_5 = arith.constant 1 : i32
    %13 = arith.addi %arg1, %c1_i32_5 : i32
    %c1_i32_6 = arith.constant 1 : i32
    %14 = arith.cmpi slt, %13, %c1_i32_6 : i32
    %15 = arith.extui %14 : i1 to i32
    %c0_i32_7 = arith.constant 0 : i32
    %16 = arith.cmpi ne, %15, %c0_i32_7 : i32
    scf.if %16 {
      %c1_i32_26 = arith.constant 1 : i32
      %48 = arith.addi %arg1, %c1_i32_26 : i32
      %c1_i32_27 = arith.constant 1 : i32
      %49 = arith.addi %arg1, %c1_i32_27 : i32
      %c2_i32_28 = arith.constant 2 : i32
      %c0_i32_29 = arith.constant 0 : i32
      %50 = arith.cmpi eq, %c2_i32_28, %c0_i32_29 : i32
      %c1_i32_30 = arith.constant 1 : i32
      %51 = arith.select %50, %c1_i32_30, %c2_i32_28 : i32
      %52 = arith.remsi %49, %51 : i32
      %c0_i32_31 = arith.constant 0 : i32
      %53 = arith.cmpi ne, %52, %c0_i32_31 : i32
      %c0_i32_32 = arith.constant 0 : i32
      %54 = arith.cmpi slt, %52, %c0_i32_32 : i32
      %c0_i32_33 = arith.constant 0 : i32
      %55 = arith.cmpi slt, %51, %c0_i32_33 : i32
      %56 = arith.xori %54, %55 : i1
      %57 = arith.andi %56, %53 : i1
      %58 = arith.addi %52, %51 : i32
      %59 = arith.select %57, %58, %52 : i32
      %c128_i32 = arith.constant 128 : i32
      %60 = arith.muli %48, %c128_i32 : i32
      %c0_i32_34 = arith.constant 0 : i32
      %c128_i32_35 = arith.constant 128 : i32
      %61 = arith.addi %c0_i32_34, %c128_i32_35 : i32
      %c1_i32_36 = arith.constant 1 : i32
      scf.for %arg14 = %c0_i32_34 to %61 step %c1_i32_36  : i32 {
        %c1_i32_38 = arith.constant 1 : i32
        %62 = arith.muli %arg14, %c1_i32_38 : i32
        %c0_i32_39 = arith.constant 0 : i32
        %63 = arith.addi %c0_i32_39, %62 : i32
        %64 = arith.addi %60, %63 : i32
        %65 = arith.index_cast %64 : i32 to index
        %66 = memref.load %arg2[%65] : memref<128xi32, #tpu.memory_space<smem>>
        %c0_i32_40 = arith.constant 0 : i32
        %67 = tpu.memref_slice %arg4[%66, %c0_i32_40] : memref<128x128xf32, #tpu.memory_space<any>> -> memref<1x128xf32, #tpu.memory_space<any>>
        %c0_i32_41 = arith.constant 0 : i32
        %68 = tpu.memref_slice %arg10[%59, %63, %c0_i32_41] : memref<2x128x128xf32, #tpu.memory_space<vmem>> -> memref<1x1x128xf32, #tpu.memory_space<vmem>>
        %69 = tpu.memref_squeeze %68 : memref<1x1x128xf32, #tpu.memory_space<vmem>> -> memref<1x128xf32, #tpu.memory_space<vmem>>
        %70 = tpu.memref_slice %arg13[%59] : memref<2x!tpu.dma_semaphore, #tpu.memory_space<semaphore_mem>> -> memref<1x!tpu.dma_semaphore, #tpu.memory_space<semaphore_mem>>
        %71 = tpu.memref_squeeze %70 : memref<1x!tpu.dma_semaphore, #tpu.memory_space<semaphore_mem>> -> memref<!tpu.dma_semaphore, #tpu.memory_space<semaphore_mem>>
        tpu.enqueue_dma source(%67 : memref<1x128xf32, #tpu.memory_space<any>>) target(%69 : memref<1x128xf32, #tpu.memory_space<vmem>>) target_semaphore(%71 : memref<!tpu.dma_semaphore, #tpu.memory_space<semaphore_mem>>)
      }
      %c128_i32_37 = arith.constant 128 : i32
    } else {
    }
    %c0_i32_8 = arith.constant 0 : i32
    %c0_i32_9 = arith.constant 0 : i32
    %17 = tpu.memref_slice %arg4[%c0_i32_8, %c0_i32_9] : memref<128x128xf32, #tpu.memory_space<any>> -> memref<128x128xf32, #tpu.memory_space<any>>
    %c0_i32_10 = arith.constant 0 : i32
    %c0_i32_11 = arith.constant 0 : i32
    %18 = tpu.memref_slice %arg10[%9, %c0_i32_10, %c0_i32_11] : memref<2x128x128xf32, #tpu.memory_space<vmem>> -> memref<1x128x128xf32, #tpu.memory_space<vmem>>
    %19 = tpu.memref_squeeze %18 : memref<1x128x128xf32, #tpu.memory_space<vmem>> -> memref<128x128xf32, #tpu.memory_space<vmem>>
    %20 = tpu.memref_slice %arg13[%9] : memref<2x!tpu.dma_semaphore, #tpu.memory_space<semaphore_mem>> -> memref<1x!tpu.dma_semaphore, #tpu.memory_space<semaphore_mem>>
    %21 = tpu.memref_squeeze %20 : memref<1x!tpu.dma_semaphore, #tpu.memory_space<semaphore_mem>> -> memref<!tpu.dma_semaphore, #tpu.memory_space<semaphore_mem>>
    tpu.wait_dma2 semaphore(%21 : memref<!tpu.dma_semaphore, #tpu.memory_space<semaphore_mem>>) src(%17 : memref<128x128xf32, #tpu.memory_space<any>>) dst(%19 : memref<128x128xf32, #tpu.memory_space<vmem>>)
    %c0 = arith.constant 0 : index
    %c0_12 = arith.constant 0 : index
    %22 = vector.load %arg3[%c0, %c0_12] : memref<1x128xi32, #tpu.memory_space<vmem>>, vector<1x128xi32>
    %23 = tpu.iota {dimensions = array<i32: 0>} : vector<8x128xi32>
    %c8_i32 = arith.constant 8 : i32
    %24 = arith.muli %arg0, %c8_i32 : i32
    %25 = vector.broadcast %24 : i32 to vector<8x128xi32>
    %26 = arith.addi %23, %25 : vector<8x128xi32>
    %27 = vector.broadcast %22 : vector<1x128xi32> to vector<8x128xi32>
    %28 = arith.cmpi eq, %27, %26 : vector<8x128xi32>
    %29 = arith.extui %28 : vector<8x128xi1> to vector<8x128xi32>
    %30 = arith.sitofp %29 : vector<8x128xi32> to vector<8x128xf32>
    %c0_13 = arith.constant 0 : index
    %c0_14 = arith.constant 0 : index
    %31 = vector.load %arg11[%c0_13, %c0_14] : memref<8x128xf32, #tpu.memory_space<vmem>>, vector<8x128xf32>
    %32 = arith.index_cast %9 : i32 to index
    %c0_15 = arith.constant 0 : index
    %c0_16 = arith.constant 0 : index
    %33 = vector.load %arg10[%32, %c0_15, %c0_16] : memref<2x128x128xf32, #tpu.memory_space<vmem>>, vector<1x128x128xf32>
    %34 = vector.shape_cast %33 : vector<1x128x128xf32> to vector<128x128xf32>
    %cst = arith.constant dense<0.000000e+00> : vector<8x128xf32>
    %35 = tpu.matmul %30, %34, %cst {dimension_numbers = #tpu.dot_dimension_numbers<[1], [0], [0], [1], [0, 0, 1, 1], [], []>} : vector<8x128xf32>, vector<128x128xf32>, vector<8x128xf32> -> vector<8x128xf32>
    %36 = arith.addf %31, %35 : vector<8x128xf32>
    %c0_17 = arith.constant 0 : index
    %c0_18 = arith.constant 0 : index
    %37 = vector.load %arg11[%c0_17, %c0_18] : memref<8x128xf32, #tpu.memory_space<vmem>>, vector<8x128xf32>
    tpu.vector_store %arg11[%c0_17, %c0_18], %36 {strides = array<i32>} : memref<8x128xf32, #tpu.memory_space<vmem>>, vector<8x128xf32>,
    %c0_19 = arith.constant 0 : index
    %c0_20 = arith.constant 0 : index
    %38 = vector.load %arg12[%c0_19, %c0_20] : memref<8x1xf32, #tpu.memory_space<vmem>>, vector<8x1xf32>
    %39 = arith.extui %28 : vector<8x128xi1> to vector<8x128xi32>
    %cst_21 = arith.constant dense<0> : vector<8xi32>
    %40 = vector.multi_reduction <add>, %39, %cst_21 [1] : vector<8x128xi32> to vector<8xi32>
    %41 = vector.shape_cast %40 : vector<8xi32> to vector<8x1xi32>
    %42 = arith.sitofp %41 : vector<8x1xi32> to vector<8x1xf32>
    %43 = arith.addf %38, %42 : vector<8x1xf32>
    %c0_22 = arith.constant 0 : index
    %c0_23 = arith.constant 0 : index
    %44 = vector.load %arg12[%c0_22, %c0_23] : memref<8x1xf32, #tpu.memory_space<vmem>>, vector<8x1xf32>
    tpu.vector_store %arg12[%c0_22, %c0_23], %43 {strides = array<i32>} : memref<8x1xf32, #tpu.memory_space<vmem>>, vector<8x1xf32>,
    %c0_i32_24 = arith.constant 0 : i32
    %45 = arith.cmpi eq, %arg1, %c0_i32_24 : i32
    %46 = arith.extui %45 : i1 to i32
    %c0_i32_25 = arith.constant 0 : i32
    %47 = arith.cmpi ne, %46, %c0_i32_25 : i32
    scf.if %47 {
      %c0_26 = arith.constant 0 : index
      %c0_27 = arith.constant 0 : index
      %48 = vector.load %arg12[%c0_26, %c0_27] : memref<8x1xf32, #tpu.memory_space<vmem>>, vector<8x1xf32>
      %cst_28 = arith.constant 1.000000e+00 : f32
      %49 = vector.broadcast %cst_28 : f32 to vector<8x1xf32>
      %50 = arith.maximumf %48, %49 : vector<8x1xf32>
      %51 = tpu.reciprocal %50 : vector<8x1xf32> -> vector<8x1xf32>
      %c0_29 = arith.constant 0 : index
      %c0_30 = arith.constant 0 : index
      %52 = vector.load %arg11[%c0_29, %c0_30] : memref<8x128xf32, #tpu.memory_space<vmem>>, vector<8x128xf32>
      %53 = vector.broadcast %51 : vector<8x1xf32> to vector<8x128xf32>
      %54 = arith.mulf %52, %53 : vector<8x128xf32>
      %c0_31 = arith.constant 0 : index
      %c0_32 = arith.constant 0 : index
      %55 = vector.load %arg5[%c0_31, %c0_32] : memref<8x128xf32, #tpu.memory_space<vmem>>, vector<8x128xf32>
      %c0_33 = arith.constant 0 : index
      %c0_34 = arith.constant 0 : index
      %56 = vector.load %arg6[%c0_33, %c0_34] : memref<128x128xf32, #tpu.memory_space<vmem>>, vector<128x128xf32>
      %cst_35 = arith.constant dense<0.000000e+00> : vector<8x128xf32>
      %57 = tpu.matmul %54, %56, %cst_35 {dimension_numbers = #tpu.dot_dimension_numbers<[1], [0], [0], [1], [0, 0, 1, 1], [], []>} : vector<8x128xf32>, vector<128x128xf32>, vector<8x128xf32> -> vector<8x128xf32>
      %c0_36 = arith.constant 0 : index
      %c0_37 = arith.constant 0 : index
      %58 = vector.load %arg7[%c0_36, %c0_37] : memref<128x128xf32, #tpu.memory_space<vmem>>, vector<128x128xf32>
      %cst_38 = arith.constant dense<0.000000e+00> : vector<8x128xf32>
      %59 = tpu.matmul %55, %58, %cst_38 {dimension_numbers = #tpu.dot_dimension_numbers<[1], [0], [0], [1], [0, 0, 1, 1], [], []>} : vector<8x128xf32>, vector<128x128xf32>, vector<8x128xf32> -> vector<8x128xf32>
      %60 = arith.addf %57, %59 : vector<8x128xf32>
      %c0_39 = arith.constant 0 : index
      %c0_40 = arith.constant 0 : index
      %61 = vector.load %arg8[%c0_39, %c0_40] : memref<1x128xf32, #tpu.memory_space<vmem>>, vector<1x128xf32>
      %62 = vector.broadcast %61 : vector<1x128xf32> to vector<8x128xf32>
      %63 = arith.addf %60, %62 : vector<8x128xf32>
      %64 = arith.mulf %63, %63 : vector<8x128xf32>
      %cst_41 = arith.constant dense<0.000000e+00> : vector<8xf32>
      %65 = vector.multi_reduction <add>, %64, %cst_41 [1] : vector<8x128xf32> to vector<8xf32>
      %66 = vector.shape_cast %65 : vector<8xf32> to vector<8x1xf32>
      %cst_42 = arith.constant 1.000000e-24 : f32
      %67 = vector.broadcast %cst_42 : f32 to vector<8x1xf32>
      %68 = arith.maximumf %66, %67 : vector<8x1xf32>
      %69 = math.rsqrt %68 : vector<8x1xf32>
      %70 = vector.broadcast %69 : vector<8x1xf32> to vector<8x128xf32>
      %71 = arith.mulf %63, %70 : vector<8x128xf32>
      %c0_43 = arith.constant 0 : index
      %c0_44 = arith.constant 0 : index
      %72 = vector.load %arg9[%c0_43, %c0_44] : memref<8x128xf32, #tpu.memory_space<vmem>>, vector<8x128xf32>
      tpu.vector_store %arg9[%c0_43, %c0_44], %71 {strides = array<i32>} : memref<8x128xf32, #tpu.memory_space<vmem>>, vector<8x128xf32>,
    } else {
    }
    return
  }
  func.func @transform_0(%arg0: i32, %arg1: i32, %arg2: memref<128xi32, #tpu.memory_space<smem>>) -> (i32, i32) {
    %c0_i32 = arith.constant 0 : i32
    %c0_i32_0 = arith.constant 0 : i32
    return %c0_i32, %arg1 : i32, i32
  }
  func.func @transform_2(%arg0: i32, %arg1: i32, %arg2: memref<128xi32, #tpu.memory_space<smem>>) -> (i32, i32) {
    %c0_i32 = arith.constant 0 : i32
    %c0_i32_0 = arith.constant 0 : i32
    return %arg0, %c0_i32 : i32, i32
  }
  func.func @transform_3(%arg0: i32, %arg1: i32, %arg2: memref<128xi32, #tpu.memory_space<smem>>) -> (i32, i32) {
    %c0_i32 = arith.constant 0 : i32
    %c0_i32_0 = arith.constant 0 : i32
    %c0_i32_1 = arith.constant 0 : i32
    return %c0_i32, %c0_i32_0 : i32, i32
  }
  func.func @transform_4(%arg0: i32, %arg1: i32, %arg2: memref<128xi32, #tpu.memory_space<smem>>) -> (i32, i32) {
    %c0_i32 = arith.constant 0 : i32
    %c0_i32_0 = arith.constant 0 : i32
    %c0_i32_1 = arith.constant 0 : i32
    return %c0_i32, %c0_i32_0 : i32, i32
  }
  func.func @transform_5(%arg0: i32, %arg1: i32, %arg2: memref<128xi32, #tpu.memory_space<smem>>) -> (i32, i32) {
    %c0_i32 = arith.constant 0 : i32
    %c0_i32_0 = arith.constant 0 : i32
    %c0_i32_1 = arith.constant 0 : i32
    return %c0_i32, %c0_i32_0 : i32, i32
  }
  func.func @transform_6(%arg0: i32, %arg1: i32, %arg2: memref<128xi32, #tpu.memory_space<smem>>) -> (i32, i32) {
    %c0_i32 = arith.constant 0 : i32
    %c0_i32_0 = arith.constant 0 : i32
    return %arg0, %c0_i32 : i32, i32
  }
}

</mosaic_0001>

<llo_original>
// kernel: tpu_custom_call.1
$region0: #{tpu_custom_call.1}
  #allocation0 [shape = 'u32[]', space=smem, size = 0x4, offset = 0x4, fixed_abs, tag = 'smem constant byte address 0x4 - core index']
  #allocation1 [shape = 'u32[144,128]{1,0:T(1,128)}', space=vmem, size = 0x12000, scoped, tag = 'internal scratch']
  #allocation2 [shape = 'f32[2,128,128]{2,1,0:T(8,128)}', space=vmem, size = 0x20000, scoped, tag = 'scratch operand']
  #allocation3 [shape = 'f32[8,128]{1,0:T(8,128)}', space=vmem, size = 0x1000, scoped, tag = 'scratch operand']
  #allocation4 [shape = 'f32[8,1]{1,0:T(8,128)}', space=vmem, size = 0x1000, scoped, tag = 'scratch operand']
  #allocation5 [shape = 's32[2]{0}', space=sflag, size = 0x8, scoped, tag = 'scratch operand']
  #allocation6 [shape = 's32[1]{0}', space=sflag, size = 0x4, scoped, tag = 'scoped memory for tpu_custom_call.1']
  #allocation7 [shape = 'u8[512]{0}', space=smem, size = 0x200, scoped, tag = 'prefetched SMEM operand 0']
  #allocation15 [shape = 's32[]', space=sflag, size = 0x4, offset = 0, fixed_abs, tag = 'sflag constant byte address 0x0 - dummy sync flag']
  #allocation16 [shape = 's32[]', space=sflag, size = 0x4, offset = 0, fixed_abs, tag = 'sflag constant byte address 0x0 - dummy sync flag']
  #allocation17 [shape = 'u32[]', space=smem, size = 0x4, offset = 0x44, fixed_abs, tag = 'smem constant byte address 0x44 - assertion arg 0']
  #allocation18 [shape = 'u32[]', space=smem, size = 0x4, offset = 0x48, fixed_abs, tag = 'smem constant byte address 0x48 - assertion arg 1']
  #allocation19 [shape = 's32[]', space=sflag, size = 0x4, offset = 0, fixed_abs, tag = 'sflag constant byte address 0x0 - dummy sync flag']
  #allocation20 [shape = 's32[]', space=sflag, size = 0x4, offset = 0, fixed_abs, tag = 'sflag constant byte address 0x0 - dummy sync flag']
  %s0 = inlined_call_operand.hbm [shape: s32[128], index: 0, kind: input, shape index: {}]
  %s1 = inlined_call_operand.vmem [shape: s32[1,128], index: 1, kind: input, shape index: {}]
  %s2 = inlined_call_operand.hbm [shape: f32[128,128], index: 2, kind: input, shape index: {}]
  %s3 = inlined_call_operand.hbm [shape: f32[128,128], index: 3, kind: input, shape index: {}]
  %s4 = inlined_call_operand.hbm [shape: f32[128,128], index: 4, kind: input, shape index: {}]
  %s5 = inlined_call_operand.hbm [shape: f32[128,128], index: 5, kind: input, shape index: {}]
  %s6 = inlined_call_operand.vmem [shape: f32[1,128], index: 6, kind: input, shape index: {}]
  %s7 = inlined_call_operand.hbm [shape: f32[8,128], index: 7, kind: output, shape index: {}]
  %s8 = sld [smem:[#allocation0]]
  $region76: #{tpu_custom_call.1} parent=0
    _
  %s10 = ssub.s32 1, %s8
  %s11 = scalar_select 0, %s10, %s8
  %13 = dma.hbm_to_smem %s0, 16, [#allocation7], [#allocation6]
  %14 = dma.done [#allocation6], 16
  %15 = sfence
  $region1: #{tpu_custom_call.1} parent=0
    #allocation8 [shape = 'u8[4096]{0}', space=vmem, size = 0x1000, scoped, tag = 'input window, operand 3, single buffered']
    #allocation9 [shape = 's32[1]{0}', space=sflag, size = 0x4, scoped, tag = 'scoped memory for tpu_custom_call.1']
    #allocation10 [shape = 's32[1]{0}', space=sflag, size = 0x4, scoped, tag = 'scoped memory for tpu_custom_call.1']
    #allocation11 [shape = 'u8[65536]{0}', space=vmem, size = 0x10000, scoped, tag = 'input window, operand 4, single buffered']
    #allocation12 [shape = 's32[1]{0}', space=sflag, size = 0x4, scoped, tag = 'scoped memory for tpu_custom_call.1']
    #allocation13 [shape = 'u8[65536]{0}', space=vmem, size = 0x10000, scoped, tag = 'input window, operand 5, single buffered']
    #allocation14 [shape = 'u8[4096]{0}', space=vmem, size = 0x1000, scoped, tag = 'output window, operand 0, single buffered']
    %16 = vsyncpa [#allocation9], 0
    %17 = vsyncpa [#allocation12], 0
    %18 = vsyncpa [#allocation10], 0
    // Predicated region
    $region2: #{tpu_custom_call.1} parent=1 // pred_check
      _
    $region3: #{tpu_custom_call.1} parent=1 // pred_check_branch
      %20 = sbr.rel (0) target = $region5
    $region4: #{tpu_custom_call.1} parent=1 // pred_region
      _
    $region5: #{tpu_custom_call.1} parent=1 // pred_fallthru
      _
    // Predicated region
    $region6: #{tpu_custom_call.1} parent=1 // pred_check
      _
    $region7: #{tpu_custom_call.1} parent=1 // pred_check_branch
      %22 = sbr.rel (0) target = $region9
    $region8: #{tpu_custom_call.1} parent=1 // pred_region
      %s24 = ssub.s32 128, 128
      %25 = vsyncadd [#allocation9], %s24
      %s27 = sshll.u32 [#allocation8], 4
      %s28 = int_to_ptr.vmem [resolvable:$true] %s27
      %30 = dma.hbm_to_vmem [thread:$0]  %s3, 128, %s28, [#allocation9]
    $region9: #{tpu_custom_call.1} parent=1 // pred_fallthru
      _
    // Predicated region
    $region10: #{tpu_custom_call.1} parent=1 // pred_check
      _
    $region11: #{tpu_custom_call.1} parent=1 // pred_check_branch
      %32 = sbr.rel (0) target = $region13
    $region12: #{tpu_custom_call.1} parent=1 // pred_region
      %s34 = ssub.s32 2048, 2048
      %35 = vsyncadd [#allocation12], %s34
      %s36 = sshll.u32 [#allocation11], 4
      %s37 = int_to_ptr.vmem [resolvable:$true] %s36
      %42 = dma.hbm_to_vmem [thread:$0]  %s4, 2048, %s37, [#allocation12], 128, 128, 8
    $region13: #{tpu_custom_call.1} parent=1 // pred_fallthru
      _
    // Predicated region
    $region14: #{tpu_custom_call.1} parent=1 // pred_check
      _
    $region15: #{tpu_custom_call.1} parent=1 // pred_check_branch
      %44 = sbr.rel (0) target = $region17
    $region16: #{tpu_custom_call.1} parent=1 // pred_region
      %s46 = ssub.s32 2048, 2048
      %47 = vsyncadd [#allocation12], %s46
      %s48 = sshll.u32 [#allocation13], 4
      %s49 = int_to_ptr.vmem [resolvable:$true] %s48
      %54 = dma.hbm_to_vmem [thread:$0]  %s5, 2048, %s49, [#allocation12], 128, 128, 8
    $region17: #{tpu_custom_call.1} parent=1 // pred_fallthru
      _
    // Predicated region
    $region18: #{tpu_custom_call.1} parent=1 // pred_check
      _
    $region19: #{tpu_custom_call.1} parent=1 // pred_check_branch
      %56 = sbr.rel (0) target = $region21
    $region20: #{tpu_custom_call.1} parent=1 // pred_region
      _
    $region21: #{tpu_custom_call.1} parent=1 // pred_fallthru
      _
    // Predicated region
    $region22: #{tpu_custom_call.1} parent=1 // pred_check
      _
    $region23: #{tpu_custom_call.1} parent=1 // pred_check_branch
      %58 = sbr.rel (0) target = $region25
    $region24: #{tpu_custom_call.1} parent=1 // pred_region
      %59 = dma.done [#allocation9], 128
    $region25: #{tpu_custom_call.1} parent=1 // pred_fallthru
      _
    // Predicated region
    $region26: #{tpu_custom_call.1} parent=1 // pred_check
      _
    $region27: #{tpu_custom_call.1} parent=1 // pred_check_branch
      %61 = sbr.rel (0) target = $region29
    $region28: #{tpu_custom_call.1} parent=1 // pred_region
      %62 = dma.done [#allocation12], 2048
    $region29: #{tpu_custom_call.1} parent=1 // pred_fallthru
      _
    // Predicated region
    $region30: #{tpu_custom_call.1} parent=1 // pred_check
      _
    $region31: #{tpu_custom_call.1} parent=1 // pred_check_branch
      %64 = sbr.rel (0) target = $region33
    $region32: #{tpu_custom_call.1} parent=1 // pred_region
      %65 = dma.done [#allocation12], 2048
    $region33: #{tpu_custom_call.1} parent=1 // pred_fallthru
      _
    %s66 = ssub.s32 0, 0
    %s67 = ssub.s32 0, 0
    %p68 = scmp.ne.s32.totalorder 0, 0
    %p69 = scmp.lt.s32.totalorder 0, 0
    %p70 = pnand %p69, %p68
    %p71 = pneg %p70
    %s72 = sadd.s32 0, 2
    %s73 = scalar_select %p71, %s72, 0
    %p74 = scmp.eq.s32.totalorder 0, 0
    // Predicated region
    $region34: #{tpu_custom_call.1} parent=1 // pred_check
      %p75 = pneg %p74
    $region35: #{tpu_custom_call.1} parent=1 // pred_check_branch
      %77 = sbr.rel (%p75) target = $region37
    $region36: #{tpu_custom_call.1} parent=1 // pred_region
      %78 = vst [vmem:[#allocation3] sm:$0xff] 0.0
      %vm79 = vcmask 7168
      %80 = vst.msk [vmem:[#allocation4] sm:$0xff] %vm79, 0.0
      loop: start=0, step=1, limit=128
      $region38: #{tpu_custom_call.1} parent=36 // loop_pre_header
        _
      $region39: #{tpu_custom_call.1} parent=36 // loop_header
        %s82 = sphi 0, %s86
        %p83 = scmp.ge.s32.totalorder %s82, 128
      $region40: #{tpu_custom_call.1} parent=36 // loop_header_branch
        %85 = sbr.rel (%p83) target = $region44
      $region41: #{tpu_custom_call.1} parent=36 // loop_body
        %s87 = sld [smem:[#allocation7 + %s82]]
        %s88 = smul.addr %s87, 16
        %s89 = scalar_lea.hbm %s2, %s88
        %s90 = scalar_lea.vmem [#allocation2], %s82
        // Predicated region
        $region45: #{tpu_custom_call.1} parent=41 // pred_check
          _
        $region46: #{tpu_custom_call.1} parent=41 // pred_check_branch
          %92 = sbr.rel target = $region48
        $region47: #{tpu_custom_call.1} parent=41 // pred_region
          %93 = sst [smem:[#allocation17]] [#allocation16]
          %94 = sst [smem:[#allocation18]] [#allocation15]
        $region48: #{tpu_custom_call.1} parent=41 // pred_fallthru
          _
        %96 = shalt.err (0)
        %s98 = sshll.u32 %s90, 4
        %s99 = int_to_ptr.vmem [resolvable:$true] %s98
        %101 = dma.hbm_to_vmem [thread:$0]  %s89, 16, %s99, [#allocation5]
      $region42: #{tpu_custom_call.1} parent=36 // loop_footer
        %s86 = sadd.s32 1, %s82
      $region43: #{tpu_custom_call.1} parent=36 // loop_footer_branch
        %81 = sbr.rel target = $region39
      $region44: #{tpu_custom_call.1} parent=36 // loop_exit
        _
    $region37: #{tpu_custom_call.1} parent=1 // pred_fallthru
      _
    %s102 = sadd.s32 0, 1
    %p103 = scmp.lt.s32.totalorder %s102, 1
    // Predicated region
    $region49: #{tpu_custom_call.1} parent=1 // pred_check
      %p104 = pneg %p103
    $region50: #{tpu_custom_call.1} parent=1 // pred_check_branch
      %106 = sbr.rel (%p104) target = $region52
    $region51: #{tpu_custom_call.1} parent=1 // pred_region
      %p107 = scmp.lt.s32.totalorder %s102, 0
      %s108 = ssub.s32 0, %s102
      %s109 = scalar_select %p107, %s108, %s102
      %s110 = sand.u32 %s109, 1
      %s111 = ssub.s32 0, %s110
      %s112 = scalar_select %p107, %s111, %s110
      %p113 = scmp.ne.s32.totalorder %s112, 0
      %p114 = scmp.lt.s32.totalorder %s112, 0
      %p115 = pnand %p114, %p113
      %p116 = pneg %p115
      %s117 = sadd.s32 %s112, 2
      %s118 = scalar_select %p116, %s117, %s112
      %s119 = smul.u32 %s102, 128
      loop: start=0, step=1, limit=128
      $region53: #{tpu_custom_call.1} parent=51 // loop_pre_header
        _
      $region54: #{tpu_custom_call.1} parent=51 // loop_header
        %s121 = sphi 0, %s125
        %p122 = scmp.ge.s32.totalorder %s121, 128
      $region55: #{tpu_custom_call.1} parent=51 // loop_header_branch
        %124 = sbr.rel (%p122) target = $region59
      $region56: #{tpu_custom_call.1} parent=51 // loop_body
        %s126 = sadd.s32 %s119, %s121
        %s127 = sld [smem:[#allocation7 + %s126]]
        %s128 = smul.addr %s127, 16
        %s129 = scalar_lea.hbm %s2, %s128
        %s130 = smul.u32 %s118, 128
        %s131 = sadd.s32 %s121, %s130
        %s132 = scalar_lea.vmem [#allocation2], %s131
        %s133 = scalar_lea.sflag [#allocation5], %s118
        // Predicated region
        $region60: #{tpu_custom_call.1} parent=56 // pred_check
          _
        $region61: #{tpu_custom_call.1} parent=56 // pred_check_branch
          %135 = sbr.rel target = $region63
        $region62: #{tpu_custom_call.1} parent=56 // pred_region
          %136 = sst [smem:[#allocation17]] [#allocation20]
          %137 = sst [smem:[#allocation18]] [#allocation19]
        $region63: #{tpu_custom_call.1} parent=56 // pred_fallthru
          _
        %139 = shalt.err (0)
        %s141 = sshll.u32 %s132, 4
        %s142 = int_to_ptr.vmem [resolvable:$true] %s141
        %144 = dma.hbm_to_vmem [thread:$0]  %s129, 16, %s142, %s133
      $region57: #{tpu_custom_call.1} parent=51 // loop_footer
        %s125 = sadd.s32 1, %s121
      $region58: #{tpu_custom_call.1} parent=51 // loop_footer_branch
        %120 = sbr.rel target = $region54
      $region59: #{tpu_custom_call.1} parent=51 // loop_exit
        _
    $region52: #{tpu_custom_call.1} parent=1 // pred_fallthru
      _
    %s145 = smul.u32 %s73, 128
    %s146 = scalar_lea.vmem [#allocation2], %s145
    %s147 = scalar_lea.sflag [#allocation5], %s73
    %s148 = smul.u32 128, 1
    %s149 = sshll.u32 %s148, 4
    %150 = dma.done %s147, %s149
    %v151 = vld [vmem:[%s1] sm:$0x1]
    %v152 = vlaneseq
    %v153 = vshrl.u32 %v152, 7
    %s154 = smul.u32 0, 8
    %v155 = vstv %s154
    %v156 = vadd.s32 %v153, %v155
    %v157 = vlaneseq
    %v158 = vshrl.u32 %v157, 7
    %v159 = vsub.s32 0, %v158
    %v160 = vrot.slane %v151, %v159
    %vm161 = vcmp.eq.s32.totalorder %v160, %v156
    %v162 = vsel %vm161, 1, 0
    %v163 = vcvt.s32.f32 %v162
    %v164 = vld [vmem:[#allocation3] sm:$0xff]
    %v165 = vld [vmem:[%s146] sm:$0xff]
    %v166 = vld [vmem:[%s146 + $0x8] sm:$0xff]
    %v167 = vld [vmem:[%s146 + $0x10] sm:$0xff]
    %v168 = vld [vmem:[%s146 + $0x18] sm:$0xff]
    %v169 = vld [vmem:[%s146 + $0x20] sm:$0xff]
    %v170 = vld [vmem:[%s146 + $0x28] sm:$0xff]
    %v171 = vld [vmem:[%s146 + $0x30] sm:$0xff]
    %v172 = vld [vmem:[%s146 + $0x38] sm:$0xff]
    %v173 = vld [vmem:[%s146 + $0x40] sm:$0xff]
    %v174 = vld [vmem:[%s146 + $0x48] sm:$0xff]
    %v175 = vld [vmem:[%s146 + $0x50] sm:$0xff]
    %v176 = vld [vmem:[%s146 + $0x58] sm:$0xff]
    %v177 = vld [vmem:[%s146 + $0x60] sm:$0xff]
    %v178 = vld [vmem:[%s146 + $0x68] sm:$0xff]
    %v179 = vld [vmem:[%s146 + $0x70] sm:$0xff]
    %v180 = vld [vmem:[%s146 + $0x78] sm:$0xff]
    %181 = vmatprep.subr.mxu0 0.0
    %182 = vmatpush1.msra.mxu0 %v180
    %183 = vmatprep.subr.mxu0 0.0
    %184 = vmatpush1.msra.mxu0 %v179
    %185 = vmatprep.subr.mxu0 0.0
    %186 = vmatpush1.msra.mxu0 %v178
    %187 = vmatprep.subr.mxu0 0.0
    %188 = vmatpush1.msra.mxu0 %v177
    %189 = vmatprep.subr.mxu0 0.0
    %190 = vmatpush1.msra.mxu0 %v176
    %191 = vmatprep.subr.mxu0 0.0
    %192 = vmatpush1.msra.mxu0 %v175
    %193 = vmatprep.subr.mxu0 0.0
    %194 = vmatpush1.msra.mxu0 %v174
    %195 = vmatprep.subr.mxu0 0.0
    %196 = vmatpush1.msra.mxu0 %v173
    %197 = vmatprep.subr.mxu0 0.0
    %198 = vmatpush1.msra.mxu0 %v172
    %199 = vmatprep.subr.mxu0 0.0
    %200 = vmatpush1.msra.mxu0 %v171
    %201 = vmatprep.subr.mxu0 0.0
    %202 = vmatpush1.msra.mxu0 %v170
    %203 = vmatprep.subr.mxu0 0.0
    %204 = vmatpush1.msra.mxu0 %v169
    %205 = vmatprep.subr.mxu0 0.0
    %206 = vmatpush1.msra.mxu0 %v168
    %207 = vmatprep.subr.mxu0 0.0
    %208 = vmatpush1.msra.mxu0 %v167
    %209 = vmatprep.subr.mxu0 0.0
    %210 = vmatpush1.msra.mxu0 %v166
    %211 = vmatprep.subr.mxu0 0.0
    %212 = vmatpush1.msra.mxu0 %v165
    %213 = vmatprep.subr.mxu0 0.0
    %214 = vmatpush2.msra.mxu0 0.0
    %215 = vmatprep.subr.mxu0 0.0
    %216 = vmatpush2.msra.mxu0 0.0
    %217 = vmatprep.subr.mxu0 0.0
    %218 = vmatpush2.msra.mxu0 0.0
    %219 = vmatprep.subr.mxu0 0.0
    %220 = vmatpush2.msra.mxu0 0.0
    %221 = vmatprep.subr.mxu0 0.0
    %222 = vmatpush2.msra.mxu0 0.0
    %223 = vmatprep.subr.mxu0 0.0
    %224 = vmatpush2.msra.mxu0 0.0
    %225 = vmatprep.subr.mxu0 0.0
    %226 = vmatpush2.msra.mxu0 0.0
    %227 = vmatprep.subr.mxu0 0.0
    %228 = vmatpush2.msra.mxu0 0.0
    %229 = vmatprep.subr.mxu0 0.0
    %230 = vmatpush2.msra.mxu0 0.0
    %231 = vmatprep.subr.mxu0 0.0
    %232 = vmatpush2.msra.mxu0 0.0
    %233 = vmatprep.subr.mxu0 0.0
    %234 = vmatpush2.msra.mxu0 0.0
    %235 = vmatprep.subr.mxu0 0.0
    %236 = vmatpush2.msra.mxu0 0.0
    %237 = vmatprep.subr.mxu0 0.0
    %238 = vmatpush2.msra.mxu0 0.0
    %239 = vmatprep.subr.mxu0 0.0
    %240 = vmatpush2.msra.mxu0 0.0
    %241 = vmatprep.subr.mxu0 0.0
    %242 = vmatpush2.msra.mxu0 0.0
    %243 = vmatprep.subr.mxu0 0.0
    %244 = vmatpush2.msra.mxu0 0.0
    %245 = vmatprep.mubr.f32.mxu0 0.0
    %246 = vmatmul.mubr.f32.gmra.mxu0 %v163
    %v247 = vpop.f32.mrf.mxu0
    %v248 = vadd.f32 0.0, %v247
    %v249 = vpop.f32.mrf.mxu0
    %250 = vdwg.mxu0
    %v251 = vadd.f32 %v164, %v248
    %252 = vst [vmem:[#allocation3] sm:$0xff] %v251
    %v253 = vld [vmem:[#allocation4] sm:$0xff]
    %v254 = vand.u32 %v162, 65535
    %v255 = vshrl.u32 %v162, 16
    %v256 = vcvt.s32.f32 %v254
    %v257 = vcvt.s32.f32 %v255
    %258 = vadd.xlane.f32.xlu0 %v256
    %v259 = vpop.xlane.xlu0 %258
    %260 = vadd.xlane.f32.xlu0 %v257
    %v261 = vpop.xlane.xlu0 %260
    %v262 = vcvt.f32.s32 %v259
    %v263 = vcvt.f32.s32 %v261
    %v264 = vshll.u32 %v263, 16
    %v265 = vadd.s32 %v264, %v262
    %v266 = vcvt.s32.f32 %v265
    %v267 = vadd.f32 %v253, %v266
    %vm268 = vcmask 7168
    %269 = vst.msk [vmem:[#allocation4] sm:$0xff] %vm268, %v267
    // Predicated region
    $region64: #{tpu_custom_call.1} parent=1 // pred_check
      %p270 = pneg %p74
    $region65: #{tpu_custom_call.1} parent=1 // pred_check_branch
      %272 = sbr.rel (%p270) target = $region67
    $region66: #{tpu_custom_call.1} parent=1 // pred_region
      %v273 = vld [vmem:[#allocation4] sm:$0xff]
      %v274 = vmax.f32 %v273, 1.0
      %v275 = vrcp.pop %v274
      %v276 = vld [vmem:[#allocation3] sm:$0xff]
      %278 = vset.pattern.permute.xlu0 0
      %279 = vperm.xlu0 %278, %v275
      %v280 = vpop.permute.xlu0 %279
      %v282 = vmul.f32 %v276, %v280
      %v283 = vld [vmem:[#allocation8] sm:$0xff]
      %v284 = vld [vmem:[#allocation11] sm:$0xff]
      %v285 = vld [vmem:[#allocation11 + $0x8] sm:$0xff]
      %v286 = vld [vmem:[#allocation11 + $0x10] sm:$0xff]
      %v287 = vld [vmem:[#allocation11 + $0x18] sm:$0xff]
      %v288 = vld [vmem:[#allocation11 + $0x20] sm:$0xff]
      %v289 = vld [vmem:[#allocation11 + $0x28] sm:$0xff]
      %v290 = vld [vmem:[#allocation11 + $0x30] sm:$0xff]
      %v291 = vld [vmem:[#allocation11 + $0x38] sm:$0xff]
      %v292 = vld [vmem:[#allocation11 + $0x40] sm:$0xff]
      %v293 = vld [vmem:[#allocation11 + $0x48] sm:$0xff]
      %v294 = vld [vmem:[#allocation11 + $0x50] sm:$0xff]
      %v295 = vld [vmem:[#allocation11 + $0x58] sm:$0xff]
      %v296 = vld [vmem:[#allocation11 + $0x60] sm:$0xff]
      %v297 = vld [vmem:[#allocation11 + $0x68] sm:$0xff]
      %v298 = vld [vmem:[#allocation11 + $0x70] sm:$0xff]
      %v299 = vld [vmem:[#allocation11 + $0x78] sm:$0xff]
      %v300 = vld [vmem:[#allocation13] sm:$0xff]
      %v301 = vld [vmem:[#allocation13 + $0x8] sm:$0xff]
      %v302 = vld [vmem:[#allocation13 + $0x10] sm:$0xff]
      %v303 = vld [vmem:[#allocation13 + $0x18] sm:$0xff]
      %v304 = vld [vmem:[#allocation13 + $0x20] sm:$0xff]
      %v305 = vld [vmem:[#allocation13 + $0x28] sm:$0xff]
      %v306 = vld [vmem:[#allocation13 + $0x30] sm:$0xff]
      %v307 = vld [vmem:[#allocation13 + $0x38] sm:$0xff]
      %v308 = vld [vmem:[#allocation13 + $0x40] sm:$0xff]
      %v309 = vld [vmem:[#allocation13 + $0x48] sm:$0xff]
      %v310 = vld [vmem:[#allocation13 + $0x50] sm:$0xff]
      %v311 = vld [vmem:[#allocation13 + $0x58] sm:$0xff]
      %v312 = vld [vmem:[#allocation13 + $0x60] sm:$0xff]
      %v313 = vld [vmem:[#allocation13 + $0x68] sm:$0xff]
      %v314 = vld [vmem:[#allocation13 + $0x70] sm:$0xff]
      %v315 = vld [vmem:[#allocation13 + $0x78] sm:$0xff]
      %316 = vmatprep.subr.mxu0 0.0
      %317 = vmatpush1.msra.mxu0 %v315
      %318 = vmatprep.subr.mxu0 0.0
      %319 = vmatpush1.msra.mxu0 %v314
      %320 = vmatprep.subr.mxu0 0.0
      %321 = vmatpush1.msra.mxu0 %v313
      %322 = vmatprep.subr.mxu0 0.0
      %323 = vmatpush1.msra.mxu0 %v312
      %324 = vmatprep.subr.mxu0 0.0
      %325 = vmatpush1.msra.mxu0 %v311
      %326 = vmatprep.subr.mxu0 0.0
      %327 = vmatpush1.msra.mxu0 %v310
      %328 = vmatprep.subr.mxu0 0.0
      %329 = vmatpush1.msra.mxu0 %v309
      %330 = vmatprep.subr.mxu0 0.0
      %331 = vmatpush1.msra.mxu0 %v308
      %332 = vmatprep.subr.mxu0 0.0
      %333 = vmatpush1.msra.mxu0 %v307
      %334 = vmatprep.subr.mxu0 0.0
      %335 = vmatpush1.msra.mxu0 %v306
      %336 = vmatprep.subr.mxu0 0.0
      %337 = vmatpush1.msra.mxu0 %v305
      %338 = vmatprep.subr.mxu0 0.0
      %339 = vmatpush1.msra.mxu0 %v304
      %340 = vmatprep.subr.mxu0 0.0
      %341 = vmatpush1.msra.mxu0 %v303
      %342 = vmatprep.subr.mxu0 0.0
      %343 = vmatpush1.msra.mxu0 %v302
      %344 = vmatprep.subr.mxu0 0.0
      %345 = vmatpush1.msra.mxu0 %v301
      %346 = vmatprep.subr.mxu0 0.0
      %347 = vmatpush1.msra.mxu0 %v300
      %348 = vmatprep.subr.mxu0 0.0
      %349 = vmatpush2.msra.mxu0 0.0
      %350 = vmatprep.subr.mxu0 0.0
      %351 = vmatpush2.msra.mxu0 0.0
      %352 = vmatprep.subr.mxu0 0.0
      %353 = vmatpush2.msra.mxu0 0.0
      %354 = vmatprep.subr.mxu0 0.0
      %355 = vmatpush2.msra.mxu0 0.0
      %356 = vmatprep.subr.mxu0 0.0
      %357 = vmatpush2.msra.mxu0 0.0
      %358 = vmatprep.subr.mxu0 0.0
      %359 = vmatpush2.msra.mxu0 0.0
      %360 = vmatprep.subr.mxu0 0.0
      %361 = vmatpush2.msra.mxu0 0.0
      %362 = vmatprep.subr.mxu0 0.0
      %363 = vmatpush2.msra.mxu0 0.0
      %364 = vmatprep.subr.mxu0 0.0
      %365 = vmatpush2.msra.mxu0 0.0
      %366 = vmatprep.subr.mxu0 0.0
      %367 = vmatpush2.msra.mxu0 0.0
      %368 = vmatprep.subr.mxu0 0.0
      %369 = vmatpush2.msra.mxu0 0.0
      %370 = vmatprep.subr.mxu0 0.0
      %371 = vmatpush2.msra.mxu0 0.0
      %372 = vmatprep.subr.mxu0 0.0
      %373 = vmatpush2.msra.mxu0 0.0
      %374 = vmatprep.subr.mxu0 0.0
      %375 = vmatpush2.msra.mxu0 0.0
      %376 = vmatprep.subr.mxu0 0.0
      %377 = vmatpush2.msra.mxu0 0.0
      %378 = vmatprep.subr.mxu0 0.0
      %379 = vmatpush2.msra.mxu0 0.0
      %380 = vmatprep.mubr.f32.mxu0 0.0
      %381 = vmatmul.mubr.f32.gmra.mxu0 %v283
      %v382 = vpop.f32.mrf.mxu0
      %v383 = vadd.f32 0.0, %v382
      %v384 = vpop.f32.mrf.mxu0
      %385 = vdwg.mxu0
      %386 = vmatprep.subr.mxu0 0.0
      %387 = vmatpush1.msra.mxu0 %v299
      %388 = vmatprep.subr.mxu0 0.0
      %389 = vmatpush1.msra.mxu0 %v298
      %390 = vmatprep.subr.mxu0 0.0
      %391 = vmatpush1.msra.mxu0 %v297
      %392 = vmatprep.subr.mxu0 0.0
      %393 = vmatpush1.msra.mxu0 %v296
      %394 = vmatprep.subr.mxu0 0.0
      %395 = vmatpush1.msra.mxu0 %v295
      %396 = vmatprep.subr.mxu0 0.0
      %397 = vmatpush1.msra.mxu0 %v294
      %398 = vmatprep.subr.mxu0 0.0
      %399 = vmatpush1.msra.mxu0 %v293
      %400 = vmatprep.subr.mxu0 0.0
      %401 = vmatpush1.msra.mxu0 %v292
      %402 = vmatprep.subr.mxu0 0.0
      %403 = vmatpush1.msra.mxu0 %v291
      %404 = vmatprep.subr.mxu0 0.0
      %405 = vmatpush1.msra.mxu0 %v290
      %406 = vmatprep.subr.mxu0 0.0
      %407 = vmatpush1.msra.mxu0 %v289
      %408 = vmatprep.subr.mxu0 0.0
      %409 = vmatpush1.msra.mxu0 %v288
      %410 = vmatprep.subr.mxu0 0.0
      %411 = vmatpush1.msra.mxu0 %v287
      %412 = vmatprep.subr.mxu0 0.0
      %413 = vmatpush1.msra.mxu0 %v286
      %414 = vmatprep.subr.mxu0 0.0
      %415 = vmatpush1.msra.mxu0 %v285
      %416 = vmatprep.subr.mxu0 0.0
      %417 = vmatpush1.msra.mxu0 %v284
      %418 = vmatprep.subr.mxu0 0.0
      %419 = vmatpush2.msra.mxu0 0.0
      %420 = vmatprep.subr.mxu0 0.0
      %421 = vmatpush2.msra.mxu0 0.0
      %422 = vmatprep.subr.mxu0 0.0
      %423 = vmatpush2.msra.mxu0 0.0
      %424 = vmatprep.subr.mxu0 0.0
      %425 = vmatpush2.msra.mxu0 0.0
      %426 = vmatprep.subr.mxu0 0.0
      %427 = vmatpush2.msra.mxu0 0.0
      %428 = vmatprep.subr.mxu0 0.0
      %429 = vmatpush2.msra.mxu0 0.0
      %430 = vmatprep.subr.mxu0 0.0
      %431 = vmatpush2.msra.mxu0 0.0
      %432 = vmatprep.subr.mxu0 0.0
      %433 = vmatpush2.msra.mxu0 0.0
      %434 = vmatprep.subr.mxu0 0.0
      %435 = vmatpush2.msra.mxu0 0.0
      %436 = vmatprep.subr.mxu0 0.0
      %437 = vmatpush2.msra.mxu0 0.0
      %438 = vmatprep.subr.mxu0 0.0
      %439 = vmatpush2.msra.mxu0 0.0
      %440 = vmatprep.subr.mxu0 0.0
      %441 = vmatpush2.msra.mxu0 0.0
      %442 = vmatprep.subr.mxu0 0.0
      %443 = vmatpush2.msra.mxu0 0.0
      %444 = vmatprep.subr.mxu0 0.0
      %445 = vmatpush2.msra.mxu0 0.0
      %446 = vmatprep.subr.mxu0 0.0
      %447 = vmatpush2.msra.mxu0 0.0
      %448 = vmatprep.subr.mxu0 0.0
      %449 = vmatpush2.msra.mxu0 0.0
      %450 = vmatprep.mubr.f32.mxu0 0.0
      %451 = vmatmul.mubr.f32.gmra.mxu0 %v282
      %v452 = vpop.f32.mrf.mxu0
      %v453 = vadd.f32 %v383, %v452
      %v454 = vpop.f32.mrf.mxu0
      %455 = vdwg.mxu0
      %v456 = vld [vmem:[%s6] sm:$0x1]
      %v458 = vlaneseq
      %v459 = vshrl.u32 %v458, 7
      %v460 = vsub.s32 0, %v459
      %v461 = vrot.slane %v456, %v460
      %v463 = vadd.f32 %v453, %v461
      %v464 = vmul.f32 %v463, %v463
      %465 = vadd.xlane.f32.xlu0 %v464
      %v466 = vpop.xlane.xlu0 %465
      %v467 = vmax.f32 %v466, 1e-24
      %v468 = vrsqrt.pop %v467
      %v469 = vmul.f32 %v463, %v468
      %470 = vst [vmem:[#allocation14] sm:$0xff] %v469
    $region67: #{tpu_custom_call.1} parent=1 // pred_fallthru
      _
    // Predicated region
    $region68: #{tpu_custom_call.1} parent=1 // pred_check
      _
    $region69: #{tpu_custom_call.1} parent=1 // pred_check_branch
      %472 = sbr.rel (0) target = $region71
    $region70: #{tpu_custom_call.1} parent=1 // pred_region
      %s474 = ssub.s32 128, 128
      %475 = vsyncadd [#allocation10], %s474
      %s477 = sshll.u32 [#allocation14], 4
      %s478 = int_to_ptr.vmem [resolvable:$true] %s477
      %480 = dma.vmem_to_hbm [thread:$0]  %s478, 128, %s7, [#allocation10]
    $region71: #{tpu_custom_call.1} parent=1 // pred_fallthru
      _
    // Predicated region
    $region72: #{tpu_custom_call.1} parent=1 // pred_check
      _
    $region73: #{tpu_custom_call.1} parent=1 // pred_check_branch
      %482 = sbr.rel (0) target = $region75
    $region74: #{tpu_custom_call.1} parent=1 // pred_region
      %483 = dma.done [#allocation10], 128
    $region75: #{tpu_custom_call.1} parent=1 // pred_fallthru
      _
    %484 = vsyncpa [#allocation9], 1
    %485 = vsyncpa [#allocation12], 1
    %486 = vsyncpa [#allocation10], 1
  %487 = vsyncmov [#allocation5]
  %s488 = vpop.sfrf %487
  %p489 = scmp.eq.s32.totalorder %s488, 0
  %p490 = pneg %p489
  %492 = shalt.err (%p490)
  %s493 = scalar_lea.sflag [#allocation5], 1
  %494 = vsyncmov %s493
  %s495 = vpop.sfrf %494
  %p496 = scmp.eq.s32.totalorder %s495, 0
  %p497 = pneg %p496
  %499 = shalt.err (%p497)

</llo_original>
